<compile_context>
chip_gen: v6e
topology: v6e:2x2x1
jax: 0.10.0
libtpu: 0.0.40
codegen_flags: <defaults>
</compile_context>

<pallas_src>
import functools

import jax
import jax.numpy as jnp
from jax.experimental import pallas as pl
from jax.experimental.pallas import tpu as pltpu


def _round_up(x: int, m: int) -> int:
    return ((x + m - 1) // m) * m


def _activation(name: str, x):
    if name == "ssp":  # shifted softplus (PhysNet-style readouts)
        return jax.nn.softplus(x) - jnp.log(2.0).astype(x.dtype)
    if name == "relu":
        return jnp.maximum(x, 0.0)
    if name == "swish":
        return x * jax.nn.sigmoid(x)
    raise NotImplementedError(name)


def _readout_pool_kernel(first_ref, num_ref, seg_ref, vi_ref, w_ref, b_ref,
                         out_ref, acc_ref, cnt_ref,
                         *, activation: str, pooling_type: str, n_atoms: int, ta: int):
    i = pl.program_id(0)          # molecule tile (parallel axis)
    k = pl.program_id(1)          # atom-tile step within this molecule tile (arbitrary)
    tm = out_ref.shape[0]

    @pl.when(k == 0)
    def _init():
        acc_ref[...] = jnp.zeros_like(acc_ref)
        cnt_ref[...] = jnp.zeros_like(cnt_ref)

    # Accumulate only over the atom tiles that actually contain this molecule tile's
    # atoms (the [first, num] range comes from the sorted-segment prefetch tables).
    @pl.when(k < num_ref[i])
    def _accumulate():
        h = _activation(activation, vi_ref[...].astype(jnp.float32))     # [ta, f_in] f32

        if n_atoms % ta != 0:
            # Ragged last atom tile: vi is NOT padded in HBM, so rows >= n_atoms hold
            # garbage that must not reach the MXU (0 * NaN would poison the acc).
            tile_idx = first_ref[i] + k
            row = jax.lax.broadcasted_iota(jnp.int32, (ta, 1), 0) + tile_idx * ta
            h = jnp.where(row < n_atoms, h, 0.0)

        # One-hot scatter matrix for this (molecule tile, atom tile) pair.
        # seg pad entries are -1 and match nothing; [tm,1] iota avoids a full int tile.
        mol_rows = jax.lax.broadcasted_iota(jnp.int32, (tm, 1), 0) + i * tm
        onehot = (seg_ref[...] == mol_rows).astype(jnp.float32)          # [tm, ta]

        cnt_ref[...] += jnp.sum(onehot, axis=1, keepdims=True)           # XLU lane reduce
        acc_ref[...] += jnp.dot(onehot.astype(jnp.bfloat16),
                                h.astype(jnp.bfloat16),
                                preferred_element_type=jnp.float32)      # [tm, f_in]

    # Finalize: apply the (commuted) linear layer + bias once per molecule tile.
    @pl.when(k == pl.num_programs(1) - 1)
    def _finalize():
        cnt = cnt_ref[...]                                               # [tm, 1]
        pooled = jnp.dot(acc_ref[...], w_ref[...],
                         preferred_element_type=jnp.float32)             # f32 MXU, 1x/tile
        pooled = pooled + cnt * b_ref[...]                               # == sum_i(hW + b)
        if pooling_type == "mean":
            pooled = pooled * pl.reciprocal(jnp.maximum(cnt, 1.0), approx=False)
        out_ref[...] = pooled.astype(out_ref.dtype)


def readout_pooling(vi, atom_mol_batch, weight, bias, *, n_mols: int,
                    activation: str = "ssp", pooling_type: str = "mean",
                    atom_tile: int = 1024, mol_tile: int = 256,
                    assume_sorted: bool = True,
                    vmem_limit_bytes: int = 48 * 1024 * 1024):
    """vi: [n_atoms, f_in], atom_mol_batch: [n_atoms] int (sorted, as produced by
    torch_geometric batching), weight: [f_in, f_out], bias: [f_out].
    Returns mol_prop: [n_mols, f_out] float32."""
    if pooling_type not in ("mean", "sum"):
        raise NotImplementedError(pooling_type)

    n_atoms, f_in = vi.shape
    f_out = weight.shape[1]

    # ---- tile sizes ----
    if n_atoms <= atom_tile:
        ta = _round_up(n_atoms, 8)            # single atom tile (seg padded to ta)
    else:
        ta = _round_up(atom_tile, 128)        # multi-tile: seg lane dim must be %128
    n_atom_tiles = -(-n_atoms // ta)

    n_mols_pad = _round_up(n_mols, 8)
    tm = min(mol_tile, n_mols_pad)
    if n_mols_pad // tm < 2 and n_mols_pad >= 16:
        # v7x megacore: guarantee >=2 molecule tiles on the parallel axis.
        tm = _round_up((n_mols_pad + 1) // 2, 8)
    n_mols_pad = _round_up(n_mols_pad, tm)
    n_mol_tiles = n_mols_pad // tm

    f_out_pad = _round_up(f_out, 128)         # lane-dense output stores

    # ---- inputs: vi streamed as bf16, no full pad copy of vi (masked in-kernel) ----
    vi_bf16 = vi.astype(jnp.bfloat16)
    seg = atom_mol_batch.astype(jnp.int32)
    seg_len = n_atom_tiles * ta
    seg_p = jnp.full((1, seg_len), -1, jnp.int32).at[0, :n_atoms].set(seg)
    w_p = jnp.zeros((f_in, f_out_pad), jnp.float32).at[:, :f_out].set(
        weight.astype(jnp.float32))
    b_p = jnp.zeros((1, f_out_pad), jnp.float32).at[0, :f_out].set(
        bias.astype(jnp.float32))

    # ---- scalar-prefetch tile ranges: sorted segments => each molecule tile's atoms
    #      occupy a contiguous span of atom tiles ----
    if assume_sorted:
        mol_lo = jnp.arange(n_mol_tiles, dtype=jnp.int32) * tm
        first_atom = jnp.searchsorted(seg, mol_lo, side="left").astype(jnp.int32)
        end_atom = jnp.searchsorted(seg, mol_lo + tm, side="left").astype(jnp.int32)
        first_tile = jnp.minimum(first_atom // ta, n_atom_tiles - 1).astype(jnp.int32)
        num_tiles = jnp.where(end_atom > first_atom,
                              (end_atom - 1) // ta - first_atom // ta + 1,
                              0).astype(jnp.int32)
    else:
        first_tile = jnp.zeros((n_mol_tiles,), jnp.int32)
        num_tiles = jnp.full((n_mol_tiles,), n_atom_tiles, jnp.int32)

    def atom_tile_idx(i, k, ft, nt):
        # Clamp so the steps past this molecule tile's range re-use the resident block
        # (unchanged block index => no redundant DMA); pl.when skips their compute.
        return ft[i] + jnp.minimum(k, jnp.maximum(nt[i] - 1, 0))

    kernel = functools.partial(_readout_pool_kernel, activation=activation,
                               pooling_type=pooling_type, n_atoms=n_atoms, ta=ta)

    out = pl.pallas_call(
        kernel,
        out_shape=jax.ShapeDtypeStruct((n_mols_pad, f_out_pad), jnp.float32),
        grid_spec=pltpu.PrefetchScalarGridSpec(
            num_scalar_prefetch=2,
            grid=(n_mol_tiles, n_atom_tiles),
            in_specs=[
                # atom_mol_batch tile (data-dependent atom tile)
                pl.BlockSpec((1, ta), lambda i, k, ft, nt: (0, atom_tile_idx(i, k, ft, nt))),
                # vi tile (data-dependent atom tile, streamed bf16)
                pl.BlockSpec((ta, f_in), lambda i, k, ft, nt: (atom_tile_idx(i, k, ft, nt), 0)),
                # weight (resident)
                pl.BlockSpec((f_in, f_out_pad), lambda i, k, ft, nt: (0, 0)),
                # bias (resident)
                pl.BlockSpec((1, f_out_pad), lambda i, k, ft, nt: (0, 0)),
            ],
            out_specs=pl.BlockSpec((tm, f_out_pad), lambda i, k, ft, nt: (i, 0)),
            scratch_shapes=[pltpu.VMEM((tm, f_in), jnp.float32),   # sum of act(vi)
                            pltpu.VMEM((tm, 1), jnp.float32)],     # atom counts
        ),
        compiler_params=pltpu.CompilerParams(
            dimension_semantics=("parallel", "arbitrary"),
            vmem_limit_bytes=vmem_limit_bytes),
    )(first_tile, num_tiles, seg_p, vi_bf16, w_p, b_p)

    return out[:n_mols, :f_out]


def _reference(vi, atom_mol_batch, weight, bias, *, n_mols, activation, pooling_type):
    h = _activation(activation, vi.astype(jnp.float32))
    atom_prop = h @ weight + bias
    summed = jax.ops.segment_sum(atom_prop, atom_mol_batch, num_segments=n_mols)
    if pooling_type == "sum":
        return summed
    counts = jax.ops.segment_sum(jnp.ones((vi.shape[0],), jnp.float32),
                                 atom_mol_batch, num_segments=n_mols)
    return summed / jnp.maximum(counts, 1.0)[:, None]


if __name__ == "__main__":
    key = jax.random.PRNGKey(0)

    def run_case(case_id, n_atoms, f_in, f_out, n_mols, **kw):
        k_vi, k_w, k_b, k_seg = jax.random.split(jax.random.fold_in(key, case_id), 4)
        vi = jax.random.normal(k_vi, (n_atoms, f_in), dtype=jnp.float32)
        weight = 0.1 * jax.random.normal(k_w, (f_in, f_out), dtype=jnp.float32)
        bias = 0.01 * jax.random.normal(k_b, (f_out,), dtype=jnp.float32)
        # sorted molecule assignment, as produced by torch_geometric batching
        atom_mol_batch = jnp.sort(
            jax.random.randint(k_seg, (n_atoms,), 0, n_mols)).astype(jnp.int32)

        ok = True
        for pooling_type in ("mean", "sum"):
            got = readout_pooling(vi, atom_mol_batch, weight, bias, n_mols=n_mols,
                                  activation="ssp", pooling_type=pooling_type, **kw)
            got = jax.block_until_ready(got)
            ref = _reference(vi, atom_mol_batch, weight, bias, n_mols=n_mols,
                             activation="ssp", pooling_type=pooling_type)
            assert got.shape == (n_mols, f_out)
            # bf16 MXU operands for the per-atom scatter (f32 accumulation, f32 finalize
            # matmul) -> compare against the f32 reference with bf16-level tolerance.
            ok = ok and bool(jnp.allclose(got, ref, atol=2e-2, rtol=2e-2))
        return ok

    # Case 0: tiny single-tile configuration.
    ok = run_case(0, n_atoms=16, f_in=32, f_out=8, n_mols=4)
    # Case 1: multiple molecule tiles + multiple (ragged) atom tiles: exercises the
    # scalar-prefetch tile ranges, in-kernel ragged masking, padded/empty molecules,
    # and the parallel molecule-tile axis.
    ok = ok and run_case(1, n_atoms=300, f_in=64, f_out=10, n_mols=20,
                         atom_tile=128, mol_tile=8)

    assert ok
    print("KERNEL_OK")
</pallas_src>

<mosaic_0001>
module attributes {stable_mosaic.version = 11 : i64} {
  func.func @_readout_pool_kernel(%arg0: i32, %arg1: i32, %arg2: memref<1xi32, #tpu.memory_space<smem>>, %arg3: memref<1xi32, #tpu.memory_space<smem>>, %arg4: memref<1x16xi32, #tpu.memory_space<vmem>>, %arg5: memref<16x32xbf16, #tpu.memory_space<vmem>>, %arg6: memref<32x128xf32, #tpu.memory_space<vmem>>, %arg7: memref<1x128xf32, #tpu.memory_space<vmem>>, %arg8: memref<8x128xf32, #tpu.memory_space<vmem>>, %arg9: memref<8x32xf32, #tpu.memory_space<vmem>>, %arg10: memref<8x1xf32, #tpu.memory_space<vmem>>) attributes {dimension_semantics = [#tpu.dimension_semantics<parallel>, #tpu.dimension_semantics<arbitrary>], iteration_bounds = array<i64: 1, 1>, scalar_prefetch = 2 : i64, scratch_operands = 2 : i64, tpu.core_type = #tpu.core_type<tc>, window_params = [{transform_indices = @transform_0, window_bounds = array<i64: 1, 16>}, {transform_indices = @transform_1, window_bounds = array<i64: 16, 32>}, {pipeline_mode = #tpu.pipeline_mode<synchronous>, transform_indices = @transform_2, window_bounds = array<i64: 32, 128>}, {pipeline_mode = #tpu.pipeline_mode<synchronous>, transform_indices = @transform_3, window_bounds = array<i64: 1, 128>}, {transform_indices = @transform_4, window_bounds = array<i64: 8, 128>}]} {
    %c0_i32 = arith.constant 0 : i32
    %0 = arith.cmpi eq, %arg1, %c0_i32 : i32
    %1 = arith.extui %0 : i1 to i32
    %c0_i32_0 = arith.constant 0 : i32
    %2 = arith.cmpi ne, %1, %c0_i32_0 : i32
    scf.if %2 {
      %cst = arith.constant 0.000000e+00 : f32
      %11 = vector.broadcast %cst : f32 to vector<8x32xf32>
      %c0 = arith.constant 0 : index
      %c0_4 = arith.constant 0 : index
      %12 = vector.load %arg9[%c0, %c0_4] : memref<8x32xf32, #tpu.memory_space<vmem>>, vector<8x32xf32>
      tpu.vector_store %arg9[%c0, %c0_4], %11 {strides = array<i32>} : memref<8x32xf32, #tpu.memory_space<vmem>>, vector<8x32xf32>,
      %cst_5 = arith.constant 0.000000e+00 : f32
      %13 = vector.broadcast %cst_5 : f32 to vector<8x1xf32>
      %c0_6 = arith.constant 0 : index
      %c0_7 = arith.constant 0 : index
      %14 = vector.load %arg10[%c0_6, %c0_7] : memref<8x1xf32, #tpu.memory_space<vmem>>, vector<8x1xf32>
      tpu.vector_store %arg10[%c0_6, %c0_7], %13 {strides = array<i32>} : memref<8x1xf32, #tpu.memory_space<vmem>>, vector<8x1xf32>,
    } else {
    }
    %3 = arith.index_cast %arg0 : i32 to index
    %4 = memref.load %arg3[%3] : memref<1xi32, #tpu.memory_space<smem>>
    %5 = arith.cmpi slt, %arg1, %4 : i32
    %6 = arith.extui %5 : i1 to i32
    %c0_i32_1 = arith.constant 0 : i32
    %7 = arith.cmpi ne, %6, %c0_i32_1 : i32
    scf.if %7 {
      %c0 = arith.constant 0 : index
      %c0_4 = arith.constant 0 : index
      %11 = vector.load %arg5[%c0, %c0_4] : memref<16x32xbf16, #tpu.memory_space<vmem>>, vector<16x32xbf16>
      %12 = arith.extf %11 : vector<16x32xbf16> to vector<16x32xf32>
      %cst = arith.constant 0.000000e+00 : f32
      %13 = vector.broadcast %cst : f32 to vector<16x32xf32>
      %14 = arith.maximumf %12, %13 : vector<16x32xf32>
      %15 = vector.broadcast %cst : f32 to vector<16x32xf32>
      %16 = arith.subf %12, %15 : vector<16x32xf32>
      %17 = arith.cmpf one, %16, %16 : vector<16x32xf32>
      %18 = vector.broadcast %cst : f32 to vector<16x32xf32>
      %19 = arith.addf %12, %18 : vector<16x32xf32>
      %20 = math.absf %16 : vector<16x32xf32>
      %cst_5 = arith.constant 0.000000e+00 : f32
      %21 = vector.broadcast %cst_5 : f32 to vector<16x32xf32>
      %22 = arith.subf %21, %20 : vector<16x32xf32>
      %23 = math.exp %22 : vector<16x32xf32>
      %24 = math.log1p %23 : vector<16x32xf32>
      %25 = arith.addf %14, %24 : vector<16x32xf32>
      %26 = arith.select %17, %19, %25 : vector<16x32xi1>, vector<16x32xf32>
      %cst_6 = arith.constant 2.000000e+00 : f32
      %27 = math.log %cst_6 : f32
      %28 = vector.broadcast %27 : f32 to vector<16x32xf32>
      %29 = arith.subf %26, %28 : vector<16x32xf32>
      %30 = tpu.iota {dimensions = array<i32: 0>} : vector<8x1xi32>
      %c8_i32 = arith.constant 8 : i32
      %31 = arith.muli %arg0, %c8_i32 : i32
      %32 = vector.broadcast %31 : i32 to vector<8x1xi32>
      %33 = arith.addi %30, %32 : vector<8x1xi32>
      %c0_7 = arith.constant 0 : index
      %c0_8 = arith.constant 0 : index
      %34 = vector.load %arg4[%c0_7, %c0_8] : memref<1x16xi32, #tpu.memory_space<vmem>>, vector<1x16xi32>
      %35 = vector.broadcast %34 : vector<1x16xi32> to vector<8x16xi32>
      %36 = vector.broadcast %33 : vector<8x1xi32> to vector<8x16xi32>
      %37 = arith.cmpi eq, %35, %36 : vector<8x16xi32>
      %38 = arith.extui %37 : vector<8x16xi1> to vector<8x16xi32>
      %39 = arith.sitofp %38 : vector<8x16xi32> to vector<8x16xf32>
      %c0_9 = arith.constant 0 : index
      %c0_10 = arith.constant 0 : index
      %40 = vector.load %arg10[%c0_9, %c0_10] : memref<8x1xf32, #tpu.memory_space<vmem>>, vector<8x1xf32>
      %cst_11 = arith.constant dense<0.000000e+00> : vector<8xf32>
      %41 = vector.multi_reduction <add>, %39, %cst_11 [1] : vector<8x16xf32> to vector<8xf32>
      %42 = vector.shape_cast %41 : vector<8xf32> to vector<8x1xf32>
      %43 = arith.addf %40, %42 : vector<8x1xf32>
      %c0_12 = arith.constant 0 : index
      %c0_13 = arith.constant 0 : index
      %44 = vector.load %arg10[%c0_12, %c0_13] : memref<8x1xf32, #tpu.memory_space<vmem>>, vector<8x1xf32>
      tpu.vector_store %arg10[%c0_12, %c0_13], %43 {strides = array<i32>} : memref<8x1xf32, #tpu.memory_space<vmem>>, vector<8x1xf32>,
      %c0_14 = arith.constant 0 : index
      %c0_15 = arith.constant 0 : index
      %45 = vector.load %arg9[%c0_14, %c0_15] : memref<8x32xf32, #tpu.memory_space<vmem>>, vector<8x32xf32>
      %46 = arith.truncf %39 : vector<8x16xf32> to vector<8x16xbf16>
      %47 = arith.truncf %29 : vector<16x32xf32> to vector<16x32xbf16>
      %cst_16 = arith.constant dense<0.000000e+00> : vector<8x32xf32>
      %48 = tpu.matmul %46, %47, %cst_16 {dimension_numbers = #tpu.dot_dimension_numbers<[1], [0], [0], [1], [0, 0, 1, 1], [], []>} : vector<8x16xbf16>, vector<16x32xbf16>, vector<8x32xf32> -> vector<8x32xf32>
      %49 = arith.addf %45, %48 : vector<8x32xf32>
      %c0_17 = arith.constant 0 : index
      %c0_18 = arith.constant 0 : index
      %50 = vector.load %arg9[%c0_17, %c0_18] : memref<8x32xf32, #tpu.memory_space<vmem>>, vector<8x32xf32>
      tpu.vector_store %arg9[%c0_17, %c0_18], %49 {strides = array<i32>} : memref<8x32xf32, #tpu.memory_space<vmem>>, vector<8x32xf32>,
    } else {
    }
    %c0_i32_2 = arith.constant 0 : i32
    %8 = arith.cmpi eq, %arg1, %c0_i32_2 : i32
    %9 = arith.extui %8 : i1 to i32
    %c0_i32_3 = arith.constant 0 : i32
    %10 = arith.cmpi ne, %9, %c0_i32_3 : i32
    scf.if %10 {
      %c0 = arith.constant 0 : index
      %c0_4 = arith.constant 0 : index
      %11 = vector.load %arg10[%c0, %c0_4] : memref<8x1xf32, #tpu.memory_space<vmem>>, vector<8x1xf32>
      %c0_5 = arith.constant 0 : index
      %c0_6 = arith.constant 0 : index
      %12 = vector.load %arg9[%c0_5, %c0_6] : memref<8x32xf32, #tpu.memory_space<vmem>>, vector<8x32xf32>
      %c0_7 = arith.constant 0 : index
      %c0_8 = arith.constant 0 : index
      %13 = vector.load %arg6[%c0_7, %c0_8] : memref<32x128xf32, #tpu.memory_space<vmem>>, vector<32x128xf32>
      %cst = arith.constant dense<0.000000e+00> : vector<8x128xf32>
      %14 = tpu.matmul %12, %13, %cst {dimension_numbers = #tpu.dot_dimension_numbers<[1], [0], [0], [1], [0, 0, 1, 1], [], []>} : vector<8x32xf32>, vector<32x128xf32>, vector<8x128xf32> -> vector<8x128xf32>
      %c0_9 = arith.constant 0 : index
      %c0_10 = arith.constant 0 : index
      %15 = vector.load %arg7[%c0_9, %c0_10] : memref<1x128xf32, #tpu.memory_space<vmem>>, vector<1x128xf32>
      %16 = vector.broadcast %11 : vector<8x1xf32> to vector<8x128xf32>
      %17 = vector.broadcast %15 : vector<1x128xf32> to vector<8x128xf32>
      %18 = arith.mulf %16, %17 : vector<8x128xf32>
      %19 = arith.addf %14, %18 : vector<8x128xf32>
      %cst_11 = arith.constant 1.000000e+00 : f32
      %20 = vector.broadcast %cst_11 : f32 to vector<8x1xf32>
      %21 = arith.maximumf %11, %20 : vector<8x1xf32>
      %22 = tpu.reciprocal %21 : vector<8x1xf32> -> vector<8x1xf32>
      %23 = vector.broadcast %22 : vector<8x1xf32> to vector<8x128xf32>
      %24 = arith.mulf %19, %23 : vector<8x128xf32>
      %c0_12 = arith.constant 0 : index
      %c0_13 = arith.constant 0 : index
      %25 = vector.load %arg8[%c0_12, %c0_13] : memref<8x128xf32, #tpu.memory_space<vmem>>, vector<8x128xf32>
      tpu.vector_store %arg8[%c0_12, %c0_13], %24 {strides = array<i32>} : memref<8x128xf32, #tpu.memory_space<vmem>>, vector<8x128xf32>,
    } else {
    }
    return
  }
  func.func @transform_0(%arg0: i32, %arg1: i32, %arg2: memref<1xi32, #tpu.memory_space<smem>>, %arg3: memref<1xi32, #tpu.memory_space<smem>>) -> (i32, i32) {
    %0 = arith.index_cast %arg0 : i32 to index
    %1 = memref.load %arg2[%0] : memref<1xi32, #tpu.memory_space<smem>>
    %2 = arith.index_cast %arg0 : i32 to index
    %3 = memref.load %arg3[%2] : memref<1xi32, #tpu.memory_space<smem>>
    %c1_i32 = arith.constant 1 : i32
    %4 = arith.subi %3, %c1_i32 : i32
    %c0_i32 = arith.constant 0 : i32
    %5 = arith.maxsi %4, %c0_i32 : i32
    %6 = arith.minsi %arg1, %5 : i32
    %7 = arith.addi %1, %6 : i32
    %c0_i32_0 = arith.constant 0 : i32
    %c0_i32_1 = arith.constant 0 : i32
    return %c0_i32_0, %7 : i32, i32
  }
  func.func @transform_1(%arg0: i32, %arg1: i32, %arg2: memref<1xi32, #tpu.memory_space<smem>>, %arg3: memref<1xi32, #tpu.memory_space<smem>>) -> (i32, i32) {
    %0 = arith.index_cast %arg0 : i32 to index
    %1 = memref.load %arg2[%0] : memref<1xi32, #tpu.memory_space<smem>>
    %2 = arith.index_cast %arg0 : i32 to index
    %3 = memref.load %arg3[%2] : memref<1xi32, #tpu.memory_space<smem>>
    %c1_i32 = arith.constant 1 : i32
    %4 = arith.subi %3, %c1_i32 : i32
    %c0_i32 = arith.constant 0 : i32
    %5 = arith.maxsi %4, %c0_i32 : i32
    %6 = arith.minsi %arg1, %5 : i32
    %7 = arith.addi %1, %6 : i32
    %c0_i32_0 = arith.constant 0 : i32
    %c0_i32_1 = arith.constant 0 : i32
    return %7, %c0_i32_0 : i32, i32
  }
  func.func @transform_2(%arg0: i32, %arg1: i32, %arg2: memref<1xi32, #tpu.memory_space<smem>>, %arg3: memref<1xi32, #tpu.memory_space<smem>>) -> (i32, i32) {
    %c0_i32 = arith.constant 0 : i32
    %c0_i32_0 = arith.constant 0 : i32
    %c0_i32_1 = arith.constant 0 : i32
    return %c0_i32, %c0_i32_0 : i32, i32
  }
  func.func @transform_3(%arg0: i32, %arg1: i32, %arg2: memref<1xi32, #tpu.memory_space<smem>>, %arg3: memref<1xi32, #tpu.memory_space<smem>>) -> (i32, i32) {
    %c0_i32 = arith.constant 0 : i32
    %c0_i32_0 = arith.constant 0 : i32
    %c0_i32_1 = arith.constant 0 : i32
    return %c0_i32, %c0_i32_0 : i32, i32
  }
  func.func @transform_4(%arg0: i32, %arg1: i32, %arg2: memref<1xi32, #tpu.memory_space<smem>>, %arg3: memref<1xi32, #tpu.memory_space<smem>>) -> (i32, i32) {
    %c0_i32 = arith.constant 0 : i32
    %c0_i32_0 = arith.constant 0 : i32
    return %arg0, %c0_i32 : i32, i32
  }
}

</mosaic_0001>

<llo_original>
// kernel: tpu_custom_call.1
$region0: #{tpu_custom_call.1}
  #allocation0 [shape = 'u32[]', space=smem, size = 0x4, offset = 0x4, fixed_abs, tag = 'smem constant byte address 0x4 - core index']
  #allocation1 [shape = 'u32[144,128]{1,0:T(1,128)}', space=vmem, size = 0x12000, scoped, tag = 'internal scratch']
  #allocation2 [shape = 'f32[8,32]{1,0:T(8,128)}', space=vmem, size = 0x1000, scoped, tag = 'scratch operand']
  #allocation3 [shape = 'f32[8,1]{1,0:T(8,128)}', space=vmem, size = 0x1000, scoped, tag = 'scratch operand']
  #allocation4 [shape = 's32[1]{0}', space=sflag, size = 0x4, scoped, tag = 'scoped memory for tpu_custom_call.1']
  #allocation5 [shape = 's32[1]{0:T(128)S(6)}', space=smem, size = 0x200, scoped, tag = 'prefetched SMEM operand 0']
  #allocation6 [shape = 's32[1]{0:T(128)S(6)}', space=smem, size = 0x200, scoped, tag = 'prefetched SMEM operand 1']
  %s0 = inlined_call_operand.<no memory space> [shape: s32[1], index: 0, kind: input, shape index: {}]
  %s1 = inlined_call_operand.<no memory space> [shape: s32[1], index: 1, kind: input, shape index: {}]
  %s2 = inlined_call_operand.vmem [shape: s32[1,16], index: 2, kind: input, shape index: {}]
  %s3 = inlined_call_operand.hbm [shape: bf16[16,32], index: 3, kind: input, shape index: {}]
  %s4 = inlined_call_operand.hbm [shape: f32[32,128], index: 4, kind: input, shape index: {}]
  %s5 = inlined_call_operand.vmem [shape: f32[1,128], index: 5, kind: input, shape index: {}]
  %s6 = inlined_call_operand.hbm [shape: f32[8,128], index: 6, kind: output, shape index: {}]
  %s7 = sld [smem:[#allocation0]]
  $region46: #{tpu_custom_call.1} parent=0
    _
  %s9 = ssub.s32 1, %s7
  %s10 = scalar_select 0, %s9, %s7
  %11 = sst [smem:[#allocation5]] %s0
  %12 = sst [smem:[#allocation6]] %s1
  $region1: #{tpu_custom_call.1} parent=0
    #allocation7 [shape = 'u8[4096]{0}', space=vmem, size = 0x1000, scoped, tag = 'input window, operand 3, single buffered']
    #allocation8 [shape = 's32[1]{0}', space=sflag, size = 0x4, scoped, tag = 'scoped memory for tpu_custom_call.1']
    #allocation9 [shape = 's32[1]{0}', space=sflag, size = 0x4, scoped, tag = 'scoped memory for tpu_custom_call.1']
    #allocation10 [shape = 'u8[16384]{0}', space=vmem, size = 0x4000, scoped, tag = 'input window, operand 4, single buffered']
    #allocation11 [shape = 's32[1]{0}', space=sflag, size = 0x4, scoped, tag = 'scoped memory for tpu_custom_call.1']
    #allocation12 [shape = 'u8[4096]{0}', space=vmem, size = 0x1000, scoped, tag = 'output window, operand 0, single buffered']
    %13 = vsyncpa [#allocation8], 0
    %14 = vsyncpa [#allocation11], 0
    %15 = vsyncpa [#allocation9], 0
    // Predicated region
    $region2: #{tpu_custom_call.1} parent=1 // pred_check
      _
    $region3: #{tpu_custom_call.1} parent=1 // pred_check_branch
      %17 = sbr.rel (0) target = $region5
    $region4: #{tpu_custom_call.1} parent=1 // pred_region
      %s18 = sld [smem:[#allocation5]]
      %s19 = sld [smem:[#allocation6]]
      %s20 = ssub.s32 %s19, 1
      %p21 = scmp.gt.s32.totalorder %s20, 0
      %s22 = scalar_select %p21, %s20, 0
      %p23 = scmp.lt.s32.totalorder 0, %s22
      %s24 = scalar_select %p23, 0, %s22
      %s25 = sadd.s32 %s18, %s24
      %p26 = scmp.lt.s32.totalorder %s25, 0
      %s27 = scalar_select %p26, %s25, 0
      %s28 = scalar_lea.vmem %s2, %s27
      %s29 = sld [smem:[#allocation5]]
      %s30 = sld [smem:[#allocation6]]
      %s31 = ssub.s32 %s30, 1
      %p32 = scmp.gt.s32.totalorder %s31, 0
      %s33 = scalar_select %p32, %s31, 0
      %p34 = scmp.lt.s32.totalorder 0, %s33
      %s35 = scalar_select %p34, 0, %s33
      %s36 = sadd.s32 %s29, %s35
    $region5: #{tpu_custom_call.1} parent=1 // pred_fallthru
      _
    // Predicated region
    $region6: #{tpu_custom_call.1} parent=1 // pred_check
      _
    $region7: #{tpu_custom_call.1} parent=1 // pred_check_branch
      %38 = sbr.rel (0) target = $region9
    $region8: #{tpu_custom_call.1} parent=1 // pred_region
      %s39 = sld [smem:[#allocation5]]
      %s40 = sld [smem:[#allocation6]]
      %s41 = ssub.s32 %s40, 1
      %p42 = scmp.gt.s32.totalorder %s41, 0
      %s43 = scalar_select %p42, %s41, 0
      %p44 = scmp.lt.s32.totalorder 0, %s43
      %s45 = scalar_select %p44, 0, %s43
      %s46 = sadd.s32 %s39, %s45
      %s47 = smul.u32 2, %s46
      %s49 = ssub.s32 128, 128
      %50 = vsyncadd [#allocation8], %s49
      %s51 = smul.addr %s47, 64
      %s52 = scalar_lea.hbm %s3, %s51
      %s53 = sshll.u32 [#allocation7], 4
      %s54 = int_to_ptr.vmem [resolvable:$true] %s53
      %59 = dma.hbm_to_vmem [thread:$0]  %s52, 128, %s54, [#allocation8], 64, 64, 4
    $region9: #{tpu_custom_call.1} parent=1 // pred_fallthru
      _
    // Predicated region
    $region10: #{tpu_custom_call.1} parent=1 // pred_check
      _
    $region11: #{tpu_custom_call.1} parent=1 // pred_check_branch
      %61 = sbr.rel (0) target = $region13
    $region12: #{tpu_custom_call.1} parent=1 // pred_region
      %s63 = ssub.s32 512, 512
      %64 = vsyncadd [#allocation11], %s63
      %s65 = sshll.u32 [#allocation10], 4
      %s66 = int_to_ptr.vmem [resolvable:$true] %s65
      %71 = dma.hbm_to_vmem [thread:$0]  %s4, 512, %s66, [#allocation11], 128, 128, 8
    $region13: #{tpu_custom_call.1} parent=1 // pred_fallthru
      _
    // Predicated region
    $region14: #{tpu_custom_call.1} parent=1 // pred_check
      _
    $region15: #{tpu_custom_call.1} parent=1 // pred_check_branch
      %73 = sbr.rel (0) target = $region17
    $region16: #{tpu_custom_call.1} parent=1 // pred_region
      _
    $region17: #{tpu_custom_call.1} parent=1 // pred_fallthru
      _
    // Predicated region
    $region18: #{tpu_custom_call.1} parent=1 // pred_check
      _
    $region19: #{tpu_custom_call.1} parent=1 // pred_check_branch
      %75 = sbr.rel (0) target = $region21
    $region20: #{tpu_custom_call.1} parent=1 // pred_region
      %76 = dma.done [#allocation8], 128
    $region21: #{tpu_custom_call.1} parent=1 // pred_fallthru
      _
    // Predicated region
    $region22: #{tpu_custom_call.1} parent=1 // pred_check
      _
    $region23: #{tpu_custom_call.1} parent=1 // pred_check_branch
      %78 = sbr.rel (0) target = $region25
    $region24: #{tpu_custom_call.1} parent=1 // pred_region
      %79 = dma.done [#allocation11], 512
    $region25: #{tpu_custom_call.1} parent=1 // pred_fallthru
      _
    %s80 = sld [smem:[#allocation5]]
    %s81 = sld [smem:[#allocation6]]
    %s82 = ssub.s32 %s81, 1
    %p83 = scmp.gt.s32.totalorder %s82, 0
    %s84 = scalar_select %p83, %s82, 0
    %p85 = scmp.lt.s32.totalorder 0, %s84
    %s86 = scalar_select %p85, 0, %s84
    %s87 = sadd.s32 %s80, %s86
    %p88 = scmp.lt.s32.totalorder %s87, 0
    %s89 = scalar_select %p88, %s87, 0
    %s90 = scalar_lea.vmem %s2, %s89
    %s91 = sld [smem:[#allocation5]]
    %s92 = sld [smem:[#allocation6]]
    %s93 = ssub.s32 %s92, 1
    %p94 = scmp.gt.s32.totalorder %s93, 0
    %s95 = scalar_select %p94, %s93, 0
    %p96 = scmp.lt.s32.totalorder 0, %s95
    %s97 = scalar_select %p96, 0, %s95
    %s98 = sadd.s32 %s91, %s97
    %p99 = scmp.lt.s32.totalorder %s98, 0
    %s100 = scalar_select %p99, %s98, 0
    %s101 = scalar_lea.vmem %s2, %s100
    %s102 = sld [smem:[#allocation5]]
    %s103 = sld [smem:[#allocation6]]
    %s104 = ssub.s32 %s103, 1
    %p105 = scmp.gt.s32.totalorder %s104, 0
    %s106 = scalar_select %p105, %s104, 0
    %p107 = scmp.lt.s32.totalorder 0, %s106
    %s108 = scalar_select %p107, 0, %s106
    %s109 = sadd.s32 %s102, %s108
    %s110 = sld [smem:[#allocation5]]
    %s111 = sld [smem:[#allocation6]]
    %s112 = ssub.s32 %s111, 1
    %p113 = scmp.gt.s32.totalorder %s112, 0
    %s114 = scalar_select %p113, %s112, 0
    %p115 = scmp.lt.s32.totalorder 0, %s114
    %s116 = scalar_select %p115, 0, %s114
    %s117 = sadd.s32 %s110, %s116
    %s118 = smul.u32 2, %s117
    %p120 = scmp.eq.s32.totalorder 0, 0
    // Predicated region
    $region26: #{tpu_custom_call.1} parent=1 // pred_check
      %p121 = pneg %p120
    $region27: #{tpu_custom_call.1} parent=1 // pred_check_branch
      %123 = sbr.rel (%p121) target = $region29
    $region28: #{tpu_custom_call.1} parent=1 // pred_region
      %vm124 = vcmask 261120
      %125 = vst.msk [vmem:[#allocation2] sm:$0xff] %vm124, 0.0
      %vm126 = vcmask 7168
      %127 = vst.msk [vmem:[#allocation3] sm:$0xff] %vm126, 0.0
    $region29: #{tpu_custom_call.1} parent=1 // pred_fallthru
      _
    %s128 = sld [smem:[#allocation6]]
    %p129 = scmp.lt.s32.totalorder 0, %s128
    // Predicated region
    $region30: #{tpu_custom_call.1} parent=1 // pred_check
      %p130 = pneg %p129
    $region31: #{tpu_custom_call.1} parent=1 // pred_check_branch
      %132 = sbr.rel (%p130) target = $region33
    $region32: #{tpu_custom_call.1} parent=1 // pred_region
      %v133 = vld [vmem:[#allocation7] sm:$0xf]
      %v134 = vld [vmem:[#allocation7 + $0x4] sm:$0xf]
      %v135 = vunpack.c.l.bf16 %v133
      %v136 = vunpack.c.l.bf16 %v134
      %v137 = vmax.f32 %v135, 0.0
      %v138 = vmax.f32 %v136, 0.0
      %vm139 = vcmp.ne.f32.partialorder %v135, %v135
      %vm140 = vcmp.ne.f32.partialorder %v136, %v136
      %v141 = vadd.f32 %v135, 0.0
      %v142 = vadd.f32 %v136, 0.0
      %v143 = vand.u32 2147483647, %v135
      %v144 = vand.u32 2147483647, %v136
      %v145 = vsub.f32 0.0, %v143
      %v146 = vsub.f32 0.0, %v144
      %v147 = vmul.f32 %v145, 1.442695
      %v148 = vpow.pop %v147
      %v149 = vmul.f32 %v146, 1.442695
      %v150 = vpow.pop %v149
      %v151 = vadd.f32 %v148, 1.0
      %v152 = vlog2.pop %v151
      %v153 = vmul.f32 %v152, 0.6931472
      %v154 = vmul.f32 -0.5, %v148
      %v155 = vadd.f32 %v154, 1.0
      %v156 = vmul.f32 %v155, %v148
      %v157 = vand.u32 2147483647, %v148
      %vm158 = vcmp.lt.f32.partialorder %v157, 0.0004427343
      %v159 = vsel %vm158, %v156, %v153
      %v160 = vadd.f32 %v150, 1.0
      %v161 = vlog2.pop %v160
      %v162 = vmul.f32 %v161, 0.6931472
      %v163 = vmul.f32 -0.5, %v150
      %v164 = vadd.f32 %v163, 1.0
      %v165 = vmul.f32 %v164, %v150
      %v166 = vand.u32 2147483647, %v150
      %vm167 = vcmp.lt.f32.partialorder %v166, 0.0004427343
      %v168 = vsel %vm167, %v165, %v162
      %v169 = vadd.f32 %v137, %v159
      %v170 = vadd.f32 %v138, %v168
      %v171 = vsel %vm139, %v141, %v169
      %v172 = vsel %vm140, %v142, %v170
      %v173 = vsub.f32 %v171, 0.6931472
      %v174 = vsub.f32 %v172, 0.6931472
      %v175 = vlaneseq
      %v176 = vshrl.u32 %v175, 7
      %s177 = smul.u32 0, 8
      %v178 = vstv %s177
      %v179 = vadd.s32 %v176, %v178
      %v180 = vld [vmem:[%s101] sm:$0x1]
      %v181 = vlaneseq
      %v182 = vshrl.u32 %v181, 7
      %v183 = vsub.s32 0, %v182
      %v184 = vrot.slane %v180, %v183
      %vm185 = vcmp.eq.s32.totalorder %v184, %v179
      %v186 = vsel %vm185, 1, 0
      %v187 = vcvt.s32.f32 %v186
      %v188 = vld [vmem:[#allocation3] sm:$0xff]
      %vm189 = vcmask 130048
      %v190 = vsel %vm189, %v187, 0.0
      %191 = vadd.xlane.f32.xlu0 %v190
      %v192 = vpop.xlane.xlu0 %191
      %v193 = vadd.f32 %v188, %v192
      %vm194 = vcmask 7168
      %195 = vst.msk [vmem:[#allocation3] sm:$0xff] %vm194, %v193
      %v196 = vld [vmem:[#allocation2] sm:$0xff]
      %v197 = vpack.c.bf16 %v187, %v187
      %v198 = vpack.c.bf16 %v174, %v173
      %v200 = vsel %vm189, %v197, 0
      %202 = vmatprep.subr.bf16.mxu0 0
      %203 = vmatpush1.bf16.msra.mxu0 0
      %204 = vmatprep.subr.bf16.mxu0 0
      %205 = vmatpush1.bf16.msra.mxu0 0
      %206 = vmatprep.subr.bf16.mxu0 0
      %207 = vmatpush1.bf16.msra.mxu0 0
      %208 = vmatprep.subr.bf16.mxu0 0
      %209 = vmatpush1.bf16.msra.mxu0 0
      %210 = vmatprep.subr.bf16.mxu0 0
      %211 = vmatpush1.bf16.msra.mxu0 0
      %212 = vmatprep.subr.bf16.mxu0 0
      %213 = vmatpush1.bf16.msra.mxu0 0
      %214 = vmatprep.subr.bf16.mxu0 0
      %215 = vmatpush1.bf16.msra.mxu0 0
      %216 = vmatprep.subr.bf16.mxu0 0
      %217 = vmatpush1.bf16.msra.mxu0 %v198
      %218 = vmatprep.subr.bf16.mxu0 0
      %219 = vmatpush2.bf16.msra.mxu0 0
      %220 = vmatprep.subr.bf16.mxu0 0
      %221 = vmatpush2.bf16.msra.mxu0 0
      %222 = vmatprep.subr.bf16.mxu0 0
      %223 = vmatpush2.bf16.msra.mxu0 0
      %224 = vmatprep.subr.bf16.mxu0 0
      %225 = vmatpush2.bf16.msra.mxu0 0
      %226 = vmatprep.subr.bf16.mxu0 0
      %227 = vmatpush2.bf16.msra.mxu0 0
      %228 = vmatprep.subr.bf16.mxu0 0
      %229 = vmatpush2.bf16.msra.mxu0 0
      %230 = vmatprep.subr.bf16.mxu0 0
      %231 = vmatpush2.bf16.msra.mxu0 0
      %232 = vmatprep.subr.bf16.mxu0 0
      %233 = vmatpush2.bf16.msra.mxu0 0
      %234 = vmatprep.mubr.bf16.mxu0 0
      %235 = vmatmul.mubr.bf16.gmra.mxu0 %v200
      %v236 = vpop.f32.mrf.mxu0
      %v237 = vadd.f32 0.0, %v236
      %v238 = vpop.f32.mrf.mxu0
      %v239 = vpop.f32.mrf.mxu0
      %v240 = vpop.f32.mrf.mxu0
      %241 = vdwg.mxu0
      %v242 = vadd.f32 %v196, %v237
      %vm243 = vcmask 261120
      %244 = vst.msk [vmem:[#allocation2] sm:$0xff] %vm243, %v242
    $region33: #{tpu_custom_call.1} parent=1 // pred_fallthru
      _
    // Predicated region
    $region34: #{tpu_custom_call.1} parent=1 // pred_check
      %p245 = pneg %p120
    $region35: #{tpu_custom_call.1} parent=1 // pred_check_branch
      %247 = sbr.rel (%p245) target = $region37
    $region36: #{tpu_custom_call.1} parent=1 // pred_region
      %v248 = vld [vmem:[#allocation3] sm:$0xff]
      %v249 = vld [vmem:[#allocation2] sm:$0xff]
      %v250 = vld [vmem:[#allocation10] sm:$0xff]
      %v251 = vld [vmem:[#allocation10 + $0x8] sm:$0xff]
      %v252 = vld [vmem:[#allocation10 + $0x10] sm:$0xff]
      %v253 = vld [vmem:[#allocation10 + $0x18] sm:$0xff]
      %v254 = vld [vmem:[%s5] sm:$0x1]
      %256 = vset.pattern.permute.xlu0 0
      %257 = vperm.xlu0 %256, %v248
      %v258 = vpop.permute.xlu0 %257
      %v261 = vlaneseq
      %v262 = vshrl.u32 %v261, 7
      %v263 = vsub.s32 0, %v262
      %v264 = vrot.slane %v254, %v263
      %v266 = vmul.f32 %v258, %v264
      %vm267 = vcmask 261120
      %v269 = vsel %vm267, %v249, 0
      %271 = vmatprep.subr.mxu0 0.0
      %272 = vmatpush1.msra.mxu0 0.0
      %273 = vmatprep.subr.mxu0 0.0
      %274 = vmatpush1.msra.mxu0 0.0
      %275 = vmatprep.subr.mxu0 0.0
      %276 = vmatpush1.msra.mxu0 0.0
      %277 = vmatprep.subr.mxu0 0.0
      %278 = vmatpush1.msra.mxu0 0.0
      %279 = vmatprep.subr.mxu0 0.0
      %280 = vmatpush1.msra.mxu0 0.0
      %281 = vmatprep.subr.mxu0 0.0
      %282 = vmatpush1.msra.mxu0 0.0
      %283 = vmatprep.subr.mxu0 0.0
      %284 = vmatpush1.msra.mxu0 0.0
      %285 = vmatprep.subr.mxu0 0.0
      %286 = vmatpush1.msra.mxu0 0.0
      %287 = vmatprep.subr.mxu0 0.0
      %288 = vmatpush1.msra.mxu0 0.0
      %289 = vmatprep.subr.mxu0 0.0
      %290 = vmatpush1.msra.mxu0 0.0
      %291 = vmatprep.subr.mxu0 0.0
      %292 = vmatpush1.msra.mxu0 0.0
      %293 = vmatprep.subr.mxu0 0.0
      %294 = vmatpush1.msra.mxu0 0.0
      %295 = vmatprep.subr.mxu0 0.0
      %296 = vmatpush1.msra.mxu0 %v253
      %297 = vmatprep.subr.mxu0 0.0
      %298 = vmatpush1.msra.mxu0 %v252
      %299 = vmatprep.subr.mxu0 0.0
      %300 = vmatpush1.msra.mxu0 %v251
      %301 = vmatprep.subr.mxu0 0.0
      %302 = vmatpush1.msra.mxu0 %v250
      %303 = vmatprep.subr.mxu0 0.0
      %304 = vmatpush2.msra.mxu0 0.0
      %305 = vmatprep.subr.mxu0 0.0
      %306 = vmatpush2.msra.mxu0 0.0
      %307 = vmatprep.subr.mxu0 0.0
      %308 = vmatpush2.msra.mxu0 0.0
      %309 = vmatprep.subr.mxu0 0.0
      %310 = vmatpush2.msra.mxu0 0.0
      %311 = vmatprep.subr.mxu0 0.0
      %312 = vmatpush2.msra.mxu0 0.0
      %313 = vmatprep.subr.mxu0 0.0
      %314 = vmatpush2.msra.mxu0 0.0
      %315 = vmatprep.subr.mxu0 0.0
      %316 = vmatpush2.msra.mxu0 0.0
      %317 = vmatprep.subr.mxu0 0.0
      %318 = vmatpush2.msra.mxu0 0.0
      %319 = vmatprep.subr.mxu0 0.0
      %320 = vmatpush2.msra.mxu0 0.0
      %321 = vmatprep.subr.mxu0 0.0
      %322 = vmatpush2.msra.mxu0 0.0
      %323 = vmatprep.subr.mxu0 0.0
      %324 = vmatpush2.msra.mxu0 0.0
      %325 = vmatprep.subr.mxu0 0.0
      %326 = vmatpush2.msra.mxu0 0.0
      %327 = vmatprep.subr.mxu0 0.0
      %328 = vmatpush2.msra.mxu0 0.0
      %329 = vmatprep.subr.mxu0 0.0
      %330 = vmatpush2.msra.mxu0 0.0
      %331 = vmatprep.subr.mxu0 0.0
      %332 = vmatpush2.msra.mxu0 0.0
      %333 = vmatprep.subr.mxu0 0.0
      %334 = vmatpush2.msra.mxu0 0.0
      %335 = vmatprep.mubr.f32.mxu0 0.0
      %336 = vmatmul.mubr.f32.gmra.mxu0 %v269
      %v337 = vpop.f32.mrf.mxu0
      %v338 = vadd.f32 %v266, %v337
      %v339 = vpop.f32.mrf.mxu0
      %340 = vdwg.mxu0
      %v341 = vmax.f32 %v248, 1.0
      %v342 = vrcp.pop %v341
      %344 = vset.pattern.permute.xlu0 0
      %345 = vperm.xlu0 %344, %v342
      %v346 = vpop.permute.xlu0 %345
      %v348 = vmul.f32 %v338, %v346
      %349 = vst [vmem:[#allocation12] sm:$0xff] %v348
    $region37: #{tpu_custom_call.1} parent=1 // pred_fallthru
      _
    // Predicated region
    $region38: #{tpu_custom_call.1} parent=1 // pred_check
      _
    $region39: #{tpu_custom_call.1} parent=1 // pred_check_branch
      %351 = sbr.rel (0) target = $region41
    $region40: #{tpu_custom_call.1} parent=1 // pred_region
      %s353 = ssub.s32 128, 128
      %354 = vsyncadd [#allocation9], %s353
      %s356 = sshll.u32 [#allocation12], 4
      %s357 = int_to_ptr.vmem [resolvable:$true] %s356
      %359 = dma.vmem_to_hbm [thread:$0]  %s357, 128, %s6, [#allocation9]
    $region41: #{tpu_custom_call.1} parent=1 // pred_fallthru
      _
    // Predicated region
    $region42: #{tpu_custom_call.1} parent=1 // pred_check
      _
    $region43: #{tpu_custom_call.1} parent=1 // pred_check_branch
      %361 = sbr.rel (0) target = $region45
    $region44: #{tpu_custom_call.1} parent=1 // pred_region
      %362 = dma.done [#allocation9], 128
    $region45: #{tpu_custom_call.1} parent=1 // pred_fallthru
      _
    %363 = vsyncpa [#allocation8], 1
    %364 = vsyncpa [#allocation11], 1
    %365 = vsyncpa [#allocation9], 1

</llo_original>
